<compile_context>
chip_gen: v5e
topology: v5e:2x2
jax: 0.10.0
libtpu: 0.0.40
codegen_flags: <defaults>
</compile_context>

<pallas_src>
import math

import jax
import jax.numpy as jnp
from jax.experimental import pallas as pl
from jax.experimental.pallas import tpu as pltpu


def _ceil_div(a, b):
    return -(-a // b)


def _tpu_generation_defaults():
    """Per-generation (target_block_bytes, vmem_limit_bytes)."""
    kind = ""
    try:
        kind = jax.devices()[0].device_kind.lower()
    except Exception:
        pass
    vmem_phys = None
    try:
        vmem_phys = pltpu.get_tpu_info().vmem_capacity_bytes
    except Exception:
        pass

    if (vmem_phys is not None and vmem_phys <= (64 << 20)) or "v7" in kind:
        # v7x: 3.2 TB/s HBM, 64 MiB physical VMEM.  4 MiB blocks -> ~16 MiB
        # live (double-buffered in + out), under the 32 MiB scoped budget.
        return 4 << 20, 32 << 20
    if "v6" in kind:
        # v6e: ~1.4 TB/s HBM, 128 MiB physical VMEM.  4 MiB blocks; raise the
        # scoped limit for headroom over the 32 MiB default.
        return 4 << 20, 48 << 20
    if "v5" in kind:
        # v5e: ~820 GB/s HBM — 2 MiB blocks already ~90% of roofline.  Raise
        # the 16 MiB scoped default so 2 MiB blocks + Pallas scratch fit.
        return 2 << 20, 32 << 20
    # Unknown generation: conservative.
    return 2 << 20, 32 << 20


def _drop_path_kernel(mask_ref, x_ref, o_ref):
    # mask_ref: SMEM (B,) f32 scalar-prefetch — per-sample keep mask (already
    #           divided by keep_prob).
    # x_ref / o_ref: VMEM (1, R_TILE, L) tile for sample b = program_id(0).
    b = pl.program_id(0)
    m = mask_ref[b]

    @pl.when(m == 0.0)
    def _():
        # Dropped sample: never touches x (input DMA elided by the index_map).
        o_ref[...] = jnp.zeros_like(o_ref)

    @pl.when(m != 0.0)
    def _():
        o_ref[...] = (x_ref[...] * m.astype(x_ref.dtype)).astype(o_ref.dtype)


def drop_path_pallas(x, mask, *, lane=None, target_block_bytes=None,
                     vmem_limit_bytes=None, donate_x=False):
    """Apply per-sample mask (shape (B,)) to x (shape (B, ...)) via Pallas.

    Requires prod(x.shape[1:]) % 128 == 0 (lane-dense layout without padding).
    """
    B = x.shape[0]
    orig_shape = x.shape
    total = math.prod(x.shape[1:]) if x.ndim > 1 else 1
    assert total % 128 == 0, "drop_path_pallas needs prod(x.shape[1:]) % 128 == 0"
    itemsize = jnp.dtype(x.dtype).itemsize

    gen_block, gen_vmem = _tpu_generation_defaults()
    if target_block_bytes is None:
        target_block_bytes = gen_block
    if vmem_limit_bytes is None:
        vmem_limit_bytes = gen_vmem

    # Lane width: widest multiple of 128 that evenly divides the flattened
    # per-sample size (wider lane-dense stores -> unmasked vst, bigger DMAs).
    if lane is None:
        lane = 128
        for cand in (4096, 2048, 1024, 512, 256, 128):
            if total % cand == 0:
                lane = cand
                break
    rows = total // lane

    # Row tile: aim for ~target_block_bytes per block, multiple of the sublane
    # packing granularity (8 f32 / 16 bf16 / 32 int8), or the full row extent.
    sub = max(8, 8 * (4 // itemsize))
    target_rows = max(1, target_block_bytes // (lane * itemsize))
    r_tile = min(rows, max(sub, (target_rows // sub) * sub))

    # Keep 2x double-buffered (in + out) blocks + scratch inside the budget.
    max_block_bytes = vmem_limit_bytes // 5
    if r_tile * lane * itemsize > max_block_bytes and r_tile > sub:
        r_tile = max(sub, ((max_block_bytes // (lane * itemsize)) // sub) * sub)

    num_r = _ceil_div(rows, r_tile)

    # Guarantee enough grid steps for two TensorCores (v7x) and for the
    # double-buffered pipeline to reach steady state, even for tiny batches.
    min_steps = 8
    if B * num_r < min_steps and rows > sub:
        want_num_r = min(_ceil_div(min_steps, B), _ceil_div(rows, sub))
        new_r_tile = max(sub, _ceil_div(_ceil_div(rows, want_num_r), sub) * sub)
        if new_r_tile < r_tile:
            r_tile = new_r_tile
            num_r = _ceil_div(rows, r_tile)

    xr = x.reshape(B, rows, lane)   # metadata-only reshape for row-major x

    def x_index_map(b, r, mask_ref):
        # Dropped samples: every row-tile maps to block 0, so consecutive
        # identical block indices elide the input fetch entirely.
        return (b, jnp.where(mask_ref[b] != 0.0, r, 0), 0)

    def o_index_map(b, r, mask_ref):
        return (b, r, 0)

    grid_spec = pltpu.PrefetchScalarGridSpec(
        num_scalar_prefetch=1,
        grid=(B, num_r),
        in_specs=[pl.BlockSpec((1, r_tile, lane), x_index_map)],
        out_specs=pl.BlockSpec((1, r_tile, lane), o_index_map),
    )

    extra = {}
    if donate_x:
        # Indices count the scalar-prefetch operand: 0 = mask, 1 = x.
        # Only beneficial when the caller actually donates x (training step).
        extra["input_output_aliases"] = {1: 0}

    out = pl.pallas_call(
        _drop_path_kernel,
        out_shape=jax.ShapeDtypeStruct((B, rows, lane), x.dtype),
        grid_spec=grid_spec,
        compiler_params=pltpu.CompilerParams(
            dimension_semantics=("parallel", "parallel"),
            vmem_limit_bytes=vmem_limit_bytes),
        cost_estimate=pl.CostEstimate(
            flops=B * total,
            transcendentals=0,
            bytes_accessed=2 * B * total * itemsize),
        **extra,
    )(mask.astype(jnp.float32), xr)

    return out.reshape(orig_shape)


def drop_path(x, key, drop_prob=0.0, training=False, scale_by_keep=True,
              use_pallas=None):
    """JAX/Pallas equivalent of the PyTorch drop_path function."""
    if drop_prob == 0.0 or not training:
        return x
    keep_prob = 1.0 - drop_prob
    # Per-sample Bernoulli draw: B values only -> tiny glue, done in plain JAX.
    keep = jax.random.bernoulli(key, p=keep_prob, shape=(x.shape[0],)).astype(
        jnp.float32)
    if keep_prob > 0.0 and scale_by_keep:
        mask = keep / keep_prob
    else:
        mask = keep

    total = math.prod(x.shape[1:]) if x.ndim > 1 else 1
    lane_ok = (total % 128 == 0)
    if use_pallas is None:
        # Tiny tensors: XLA's fused elementwise beats kernel-launch glue.
        use_pallas = lane_ok and (x.size * jnp.dtype(x.dtype).itemsize >= (1 << 20))
    if not use_pallas or not lane_ok:
        bshape = (x.shape[0],) + (1,) * (x.ndim - 1)
        return x * mask.reshape(bshape).astype(x.dtype)
    return drop_path_pallas(x, mask)


class DropPath:
    """Drop paths (Stochastic Depth) per sample — JAX/Pallas version."""

    def __init__(self, drop_prob=None, scale_by_keep=True):
        self.drop_prob = drop_prob if drop_prob is not None else 0.0
        self.scale_by_keep = scale_by_keep
        self.training = True  # mimic nn.Module.train() default for the demo

    def __call__(self, x, key, use_pallas=None):
        return drop_path(x, key, self.drop_prob, self.training,
                         self.scale_by_keep, use_pallas=use_pallas)


if __name__ == "__main__":
    key = jax.random.PRNGKey(0)
    k_x, k_x2, k_mask = jax.random.split(key, 3)

    # Transformer-style input: (batch, seq, hidden) = (2, 8, 32).
    x = jax.random.normal(k_x, (2, 8, 32), dtype=jnp.float32)

    module = DropPath(drop_prob=0.25, scale_by_keep=True)
    # Force the Pallas path so the kernel is exercised even at this tiny size.
    y = jax.block_until_ready(module(x, k_mask, use_pallas=True))

    # Reference check (pure JAX) with the same mask draw.
    keep_prob = 1.0 - module.drop_prob
    keep = jax.random.bernoulli(k_mask, p=keep_prob,
                                shape=(x.shape[0],)).astype(jnp.float32)
    ref_mask = (keep / keep_prob).reshape(x.shape[0], 1, 1)
    y_ref = x * ref_mask
    assert jnp.allclose(y, y_ref, atol=1e-6, rtol=1e-6), "mismatch vs reference"

    # Multi-row-tile path with a ragged final row block and one *dropped*
    # sample (exercises the @pl.when zero path + DMA-elision index_map).
    x2 = jax.random.normal(k_x2, (2, 40, 128), dtype=jnp.float32)
    mask2 = jnp.array([0.0, 1.0 / keep_prob], dtype=jnp.float32)
    y2 = jax.block_until_ready(
        drop_path_pallas(x2, mask2, lane=128, target_block_bytes=16 * 128 * 4))
    y2_ref = x2 * mask2.reshape(2, 1, 1)
    assert jnp.allclose(y2, y2_ref, atol=1e-6, rtol=1e-6), "tiled path mismatch"

    # Eval / drop_prob=0 path must be identity.
    module.training = False
    y_eval = jax.block_until_ready(module(x, k_mask))
    assert jnp.array_equal(y_eval, x)

    # TODO(synk): for best end-to-end perf, fuse DropPath into the adjacent
    # residual add instead of running it as a standalone mem-bound kernel.
    print("KERNEL_OK")
</pallas_src>

<mosaic_0001>
module attributes {stable_mosaic.version = 11 : i64} {
  func.func @_drop_path_kernel(%arg0: i32, %arg1: i32, %arg2: memref<2xf32, #tpu.memory_space<smem>>, %arg3: memref<1x1x256xf32, #tpu.memory_space<vmem>>, %arg4: memref<1x1x256xf32, #tpu.memory_space<vmem>>) attributes {dimension_semantics = [#tpu.dimension_semantics<parallel>, #tpu.dimension_semantics<parallel>], iteration_bounds = array<i64: 2, 1>, scalar_prefetch = 1 : i64, scratch_operands = 0 : i64, tpu.core_type = #tpu.core_type<tc>, window_params = [{transform_indices = @transform_0, window_bounds = array<i64: 1, 1, 256>}, {transform_indices = @transform_1, window_bounds = array<i64: 1, 1, 256>}]} {
    %0 = arith.index_cast %arg0 : i32 to index
    %1 = memref.load %arg2[%0] : memref<2xf32, #tpu.memory_space<smem>>
    %cst = arith.constant 0.000000e+00 : f32
    %2 = arith.cmpf oeq, %1, %cst : f32
    %3 = arith.extui %2 : i1 to i32
    %c0_i32 = arith.constant 0 : i32
    %4 = arith.cmpi ne, %3, %c0_i32 : i32
    scf.if %4 {
      %cst_2 = arith.constant 0.000000e+00 : f32
      %8 = vector.broadcast %cst_2 : f32 to vector<1x1x256xf32>
      %c0 = arith.constant 0 : index
      %c0_3 = arith.constant 0 : index
      %c0_4 = arith.constant 0 : index
      %9 = vector.load %arg4[%c0, %c0_3, %c0_4] : memref<1x1x256xf32, #tpu.memory_space<vmem>>, vector<1x1x256xf32>
      tpu.vector_store %arg4[%c0, %c0_3, %c0_4], %8 {strides = array<i32>} : memref<1x1x256xf32, #tpu.memory_space<vmem>>, vector<1x1x256xf32>,
    } else {
    }
    %cst_0 = arith.constant 0.000000e+00 : f32
    %5 = arith.cmpf one, %1, %cst_0 : f32
    %6 = arith.extui %5 : i1 to i32
    %c0_i32_1 = arith.constant 0 : i32
    %7 = arith.cmpi ne, %6, %c0_i32_1 : i32
    scf.if %7 {
      %c0 = arith.constant 0 : index
      %c0_2 = arith.constant 0 : index
      %c0_3 = arith.constant 0 : index
      %8 = vector.load %arg3[%c0, %c0_2, %c0_3] : memref<1x1x256xf32, #tpu.memory_space<vmem>>, vector<1x1x256xf32>
      %9 = vector.broadcast %1 : f32 to vector<1x1x256xf32>
      %10 = arith.mulf %8, %9 : vector<1x1x256xf32>
      %c0_4 = arith.constant 0 : index
      %c0_5 = arith.constant 0 : index
      %c0_6 = arith.constant 0 : index
      %11 = vector.load %arg4[%c0_4, %c0_5, %c0_6] : memref<1x1x256xf32, #tpu.memory_space<vmem>>, vector<1x1x256xf32>
      tpu.vector_store %arg4[%c0_4, %c0_5, %c0_6], %10 {strides = array<i32>} : memref<1x1x256xf32, #tpu.memory_space<vmem>>, vector<1x1x256xf32>,
    } else {
    }
    return
  }
  func.func @transform_0(%arg0: i32, %arg1: i32, %arg2: memref<2xf32, #tpu.memory_space<smem>>) -> (i32, i32, i32) {
    %0 = arith.index_cast %arg0 : i32 to index
    %1 = memref.load %arg2[%0] : memref<2xf32, #tpu.memory_space<smem>>
    %cst = arith.constant 0.000000e+00 : f32
    %2 = arith.cmpf one, %1, %cst : f32
    %c0_i32 = arith.constant 0 : i32
    %3 = arith.select %2, %arg1, %c0_i32 : i32
    %c0_i32_0 = arith.constant 0 : i32
    %c0_i32_1 = arith.constant 0 : i32
    return %arg0, %3, %c0_i32_0 : i32, i32, i32
  }
  func.func @transform_1(%arg0: i32, %arg1: i32, %arg2: memref<2xf32, #tpu.memory_space<smem>>) -> (i32, i32, i32) {
    %c0_i32 = arith.constant 0 : i32
    %c0_i32_0 = arith.constant 0 : i32
    return %arg0, %arg1, %c0_i32 : i32, i32, i32
  }
}

</mosaic_0001>

<llo_original>
// kernel: tpu_custom_call.1
$region0: #{tpu_custom_call.1}
  #allocation0 [shape = 'u32[]', space=smem, size = 0x4, offset = 0x4, fixed_abs, tag = 'smem constant byte address 0x4 - core index']
  #allocation1 [shape = 'u32[72,128]{1,0:T(1,128)}', space=vmem, size = 0x9000, scoped, tag = 'internal scratch']
  #allocation2 [shape = 's32[1]{0}', space=sflag, size = 0x4, scoped, tag = 'scoped memory for tpu_custom_call.1']
  #allocation3 [shape = 'u8[512]{0}', space=smem, size = 0x200, scoped, tag = 'prefetched SMEM operand 0']
  %s0 = inlined_call_operand.hbm [shape: f32[2], index: 0, kind: input, shape index: {}]
  %s1 = inlined_call_operand.hbm [shape: f32[2,1,256], index: 1, kind: input, shape index: {}]
  %s2 = inlined_call_operand.hbm [shape: f32[2,1,256], index: 2, kind: output, shape index: {}]
  %s3 = sld [smem:[#allocation0]]
  $region49: #{tpu_custom_call.1} parent=0
    _
  %s5 = ssub.s32 1, %s3
  %s6 = scalar_select 0, %s5, %s3
  %s8 = sshll.u32 %s0, 4
  %s9 = int_to_ptr.hbm [resolvable:$true] %s8
  %11 = dma.hbm_to_smem %s9, 16, [#allocation3], [#allocation2]
  %13 = dma.done [#allocation2], 16
  %14 = sfence
  $region1: #{tpu_custom_call.1} parent=0
    #allocation4 [shape = 'u8[2048]{0}', space=vmem, size = 0x800, scoped, tag = 'input window, operand 1']
    #allocation5 [shape = 's32[2]{0}', space=sflag, size = 0x8, scoped, tag = 'scoped memory for tpu_custom_call.1']
    #allocation6 [shape = 's32[2]{0}', space=sflag, size = 0x8, scoped, tag = 'scoped memory for tpu_custom_call.1']
    #allocation7 [shape = 'u8[2048]{0}', space=vmem, size = 0x800, scoped, tag = 'output window, operand 0']
    %15 = vsyncpa [#allocation5], 0
    %s16 = scalar_lea.sflag [#allocation5], 1
    %17 = vsyncpa %s16, 0
    %18 = vsyncpa [#allocation6], 0
    %s19 = scalar_lea.sflag [#allocation6], 1
    %20 = vsyncpa %s19, 0
    loop: start=0, step=1, limit=4
    $region2: #{tpu_custom_call.1} parent=1 // loop_pre_header
      _
    $region3: #{tpu_custom_call.1} parent=1 // loop_header
      %s22 = sphi 0, %s26
      %p23 = scmp.ge.s32.totalorder %s22, 4
      %s29 = sphi 0, %s41
      %s30 = sphi 0, %s37
      %s31 = sphi 0, %s29
      %s32 = sphi 0, %s30
      %s33 = sphi 0, %s31
      %s34 = sphi 0, %s32
      %s52 = sphi 0, %s54
      %s55 = sphi 0, %s52
      %s56 = sphi 0, %s55
      %s72 = sphi 0, %s56
      %s80 = sphi 0, %s82
      %s83 = sphi 0, %s80
      %s84 = sphi 0, %s83
      %s100 = sphi 0, %s84
    $region4: #{tpu_custom_call.1} parent=1 // loop_header_branch
      %25 = sbr.rel (%p23) target = $region8
    $region5: #{tpu_custom_call.1} parent=1 // loop_body
      %s27 = ssub.s32 %s22, 1
      %s28 = ssub.s32 %s22, 2
      %s35 = sadd.s32 1, %s30
      %p36 = scmp.ge.s32.totalorder %s35, 1
      %s37 = scalar_select %p36, 0, %s35
      %s38 = sadd.s32 1, %s29
      %s39 = scalar_select %p36, %s38, %s29
      %p40 = scmp.ge.s32.totalorder %s39, 2
      %s41 = scalar_select %p40, 0, %s39
      %s42 = sld [smem:[#allocation3 + %s29]]
      %p43 = scmp.ne.f32.partialorder %s42, 0.0
      %s44 = scalar_select %p43, %s30, 0
      %s45 = sld [smem:[#allocation3 + %s41]]
      %p46 = scmp.ne.f32.partialorder %s45, 0.0
      %s47 = scalar_select %p46, %s37, 0
      %s48 = ssub.s32 %s29, %s41
      %s49 = ssub.s32 %s44, %s47
      %s50 = sor.u32 %s48, %s49
      %p51 = scmp.eq.s32.totalorder %s50, 0
      %s53 = sadd.s32 %s52, 1
      %s54 = scalar_select %p51, %s52, %s53
      %p57 = pneg %p51
      %p58 = scmp.eq.s32.totalorder %s22, 1
      %p59 = por %p57, %p58
      %p60 = scmp.ne.s32.totalorder %s52, %s55
      %p61 = scmp.eq.s32.totalorder %s22, 0
      %p62 = por %p60, %p61
      %p63 = scmp.ne.s32.totalorder %s52, %s55
      %p64 = scmp.eq.s32.totalorder %s27, 1
      %p65 = por %p63, %p64
      %p66 = scmp.ne.s32.totalorder %s55, %s56
      %p67 = scmp.eq.s32.totalorder %s27, 0
      %p68 = por %p66, %p67
      %p69 = scmp.ne.s32.totalorder %s55, %s56
      %p70 = scmp.eq.s32.totalorder %s28, 1
      %p71 = por %p69, %p70
      %p73 = scmp.ne.s32.totalorder %s56, %s72
      %p74 = scmp.eq.s32.totalorder %s28, 0
      %p75 = por %p73, %p74
      %s76 = ssub.s32 %s29, %s41
      %s77 = ssub.s32 %s30, %s37
      %s78 = sor.u32 %s76, %s77
      %p79 = scmp.eq.s32.totalorder %s78, 0
      %s81 = sadd.s32 %s80, 1
      %s82 = scalar_select %p79, %s80, %s81
      %p85 = pneg %p79
      %p86 = scmp.eq.s32.totalorder %s22, 1
      %p87 = por %p85, %p86
      %p88 = scmp.ne.s32.totalorder %s80, %s83
      %p89 = scmp.eq.s32.totalorder %s22, 0
      %p90 = por %p88, %p89
      %p91 = scmp.ne.s32.totalorder %s80, %s83
      %p92 = scmp.eq.s32.totalorder %s27, 1
      %p93 = por %p91, %p92
      %p94 = scmp.ne.s32.totalorder %s83, %s84
      %p95 = scmp.eq.s32.totalorder %s27, 0
      %p96 = por %p94, %p95
      %p97 = scmp.ne.s32.totalorder %s83, %s84
      %p98 = scmp.eq.s32.totalorder %s28, 1
      %p99 = por %p97, %p98
      %p101 = scmp.ne.s32.totalorder %s84, %s100
      %p102 = scmp.eq.s32.totalorder %s28, 0
      %p103 = por %p101, %p102
      %p104 = scmp.le.s32.totalorder 1, %s22
      %p105 = scmp.lt.s32.totalorder %s22, 3
      %p106 = pnand %p104, %p105
      %p107 = pneg %p106
      // Predicated region
      $region9: #{tpu_custom_call.1} parent=5 // pred_check
        _
      $region10: #{tpu_custom_call.1} parent=5 // pred_check_branch
        %109 = sbr.rel (%p106) target = $region12
      $region11: #{tpu_custom_call.1} parent=5 // pred_region
        %s110 = ssub.s32 %s22, 1
      $region12: #{tpu_custom_call.1} parent=5 // pred_fallthru
        _
      %p111 = scmp.lt.s32.totalorder %s22, 2
      // Predicated region
      $region13: #{tpu_custom_call.1} parent=5 // pred_check
        %p112 = pneg %p111
      $region14: #{tpu_custom_call.1} parent=5 // pred_check_branch
        %114 = sbr.rel (%p112) target = $region16
      $region15: #{tpu_custom_call.1} parent=5 // pred_region
        // Predicated region
        $region17: #{tpu_custom_call.1} parent=15 // pred_check
          %p115 = pneg %p62
        $region18: #{tpu_custom_call.1} parent=15 // pred_check_branch
          %117 = sbr.rel (%p115) target = $region20
        $region19: #{tpu_custom_call.1} parent=15 // pred_region
          %s118 = sand.u32 %s52, 1
          %s119 = scalar_lea.sflag [#allocation5], %s118
          %s120 = sand.u32 %s52, 1
          %s121 = smul.addr %s120, 2
          %s122 = scalar_lea.vmem [#allocation4], %s121
          %s123 = sld [smem:[#allocation3 + %s29]]
          %p124 = scmp.ne.f32.partialorder %s123, 0.0
          %s125 = scalar_select %p124, %s30, 0
          %127 = vsyncadd %s119, 0
          %s128 = smul.addr %s125, 2
          %s129 = smul.addr %s29, 2
          %s130 = sadd.s32 %s128, %s129
          %s131 = scalar_lea.hbm %s1, %s130
          %s133 = sshll.u32 %s131, 4
          %s134 = int_to_ptr.hbm [resolvable:$true] %s133
          %s135 = sshll.u32 %s122, 4
          %s136 = int_to_ptr.vmem [resolvable:$true] %s135
          %138 = dma.hbm_to_vmem [thread:$0]  %s134, 32, %s136, %s119
        $region20: #{tpu_custom_call.1} parent=15 // pred_fallthru
          _
      $region16: #{tpu_custom_call.1} parent=5 // pred_fallthru
        _
      %p139 = scmp.le.s32.totalorder 1, %s22
      %p140 = scmp.lt.s32.totalorder %s22, 3
      %p141 = pnand %p139, %p140
      %p142 = pneg %p141
      // Predicated region
      $region21: #{tpu_custom_call.1} parent=5 // pred_check
        _
      $region22: #{tpu_custom_call.1} parent=5 // pred_check_branch
        %144 = sbr.rel (%p141) target = $region24
      $region23: #{tpu_custom_call.1} parent=5 // pred_region
        %s145 = ssub.s32 %s22, 1
        %s146 = sand.u32 %s55, 1
        %s147 = scalar_lea.sflag [#allocation5], %s146
        %s148 = sand.u32 %s55, 1
        %s149 = smul.addr %s148, 2
        %s150 = scalar_lea.vmem [#allocation4], %s149
        // Predicated region
        $region25: #{tpu_custom_call.1} parent=23 // pred_check
          %p151 = pneg %p68
        $region26: #{tpu_custom_call.1} parent=23 // pred_check_branch
          %153 = sbr.rel (%p151) target = $region28
        $region27: #{tpu_custom_call.1} parent=23 // pred_region
          %155 = dma.done %s147, 32
        $region28: #{tpu_custom_call.1} parent=23 // pred_fallthru
          _
        %s156 = sand.u32 %s55, 1
        %s157 = scalar_lea.sflag [#allocation5], %s156
        %s158 = sand.u32 %s55, 1
        %s159 = smul.addr %s158, 2
        %s160 = scalar_lea.vmem [#allocation4], %s159
        %p161 = pneg %p68
        %p162 = pneg %p65
        %p163 = pneg %p96
        %p164 = pneg %p93
        %s165 = sand.u32 %s83, 1
        %s166 = scalar_lea.sflag [#allocation6], %s165
        %s167 = sand.u32 %s83, 1
        %s168 = smul.addr %s167, 2
        %s169 = scalar_lea.vmem [#allocation7], %s168
        %s170 = sld [smem:[#allocation3 + %s31]]
        %p171 = scmp.ne.f32.partialorder %s170, 0.0
        %s172 = scalar_select %p171, %s32, 0
        %s173 = sld [smem:[#allocation3 + %s31]]
        %p174 = scmp.eq.f32.partialorder %s173, 0.0
        // Predicated region
        $region29: #{tpu_custom_call.1} parent=23 // pred_check
          %p175 = pneg %p174
        $region30: #{tpu_custom_call.1} parent=23 // pred_check_branch
          %177 = sbr.rel (%p175) target = $region32
        $region31: #{tpu_custom_call.1} parent=23 // pred_region
          %v178 = vlaneseq
          %vm179 = vcmp.ge.s32.totalorder %v178, 0
          %vm180 = vcmp.lt.s32.totalorder %v178, 256
          %vm181 = vmand %vm179, %vm180
          %182 = vst.msk [vmem:[%s169] sm:$0x3] %vm181, 0.0
        $region32: #{tpu_custom_call.1} parent=23 // pred_fallthru
          _
        %p183 = scmp.ne.f32.partialorder %s173, 0.0
        // Predicated region
        $region33: #{tpu_custom_call.1} parent=23 // pred_check
          %p184 = pneg %p183
        $region34: #{tpu_custom_call.1} parent=23 // pred_check_branch
          %186 = sbr.rel (%p184) target = $region36
        $region35: #{tpu_custom_call.1} parent=23 // pred_region
          %v187 = vld [vmem:[%s150] sm:$0x3]
          %v188 = vstv %s173
          %v189 = vmul.f32 %v187, %v188
          %v190 = vlaneseq
          %vm191 = vcmp.ge.s32.totalorder %v190, 0
          %vm192 = vcmp.lt.s32.totalorder %v190, 256
          %vm193 = vmand %vm191, %vm192
          %194 = vst.msk [vmem:[%s169] sm:$0x3] %vm193, %v189
        $region36: #{tpu_custom_call.1} parent=23 // pred_fallthru
          _
        %s195 = sand.u32 %s83, 1
        %s196 = scalar_lea.sflag [#allocation6], %s195
        %s197 = sand.u32 %s83, 1
        %s198 = smul.addr %s197, 2
        %s199 = scalar_lea.vmem [#allocation7], %s198
        // Predicated region
        $region37: #{tpu_custom_call.1} parent=23 // pred_check
          %p200 = pneg %p93
        $region38: #{tpu_custom_call.1} parent=23 // pred_check_branch
          %202 = sbr.rel (%p200) target = $region40
        $region39: #{tpu_custom_call.1} parent=23 // pred_region
          %204 = vsyncadd %s196, 0
          %s205 = smul.addr %s32, 2
          %s206 = smul.addr %s31, 2
          %s207 = sadd.s32 %s205, %s206
          %s208 = scalar_lea.hbm %s2, %s207
          %s210 = sshll.u32 %s199, 4
          %s211 = int_to_ptr.vmem [resolvable:$true] %s210
          %s212 = sshll.u32 %s208, 4
          %s213 = int_to_ptr.hbm [resolvable:$true] %s212
          %215 = dma.vmem_to_hbm [thread:$0]  %s211, 32, %s213, %s196
        $region40: #{tpu_custom_call.1} parent=23 // pred_fallthru
          _
      $region24: #{tpu_custom_call.1} parent=5 // pred_fallthru
        _
      %p216 = scmp.le.s32.totalorder 2, %s22
      // Predicated region
      $region41: #{tpu_custom_call.1} parent=5 // pred_check
        %p217 = pneg %p216
      $region42: #{tpu_custom_call.1} parent=5 // pred_check_branch
        %219 = sbr.rel (%p217) target = $region44
      $region43: #{tpu_custom_call.1} parent=5 // pred_region
        %s220 = ssub.s32 %s22, 2
        // Predicated region
        $region45: #{tpu_custom_call.1} parent=43 // pred_check
          %p221 = pneg %p99
        $region46: #{tpu_custom_call.1} parent=43 // pred_check_branch
          %223 = sbr.rel (%p221) target = $region48
        $region47: #{tpu_custom_call.1} parent=43 // pred_region
          %s224 = sand.u32 %s84, 1
          %s225 = scalar_lea.sflag [#allocation6], %s224
          %s226 = sand.u32 %s84, 1
          %s227 = smul.addr %s226, 2
          %s228 = scalar_lea.vmem [#allocation7], %s227
          %230 = dma.done %s225, 32
        $region48: #{tpu_custom_call.1} parent=43 // pred_fallthru
          _
      $region44: #{tpu_custom_call.1} parent=5 // pred_fallthru
        _
    $region6: #{tpu_custom_call.1} parent=1 // loop_footer
      %s26 = sadd.s32 1, %s22
    $region7: #{tpu_custom_call.1} parent=1 // loop_footer_branch
      %21 = sbr.rel target = $region3
    $region8: #{tpu_custom_call.1} parent=1 // loop_exit
      _
    %231 = vsyncpa [#allocation5], 1
    %s232 = scalar_lea.sflag [#allocation5], 1
    %233 = vsyncpa %s232, 1
    %234 = vsyncpa [#allocation6], 1
    %s235 = scalar_lea.sflag [#allocation6], 1
    %236 = vsyncpa %s235, 1

</llo_original>
